<compile_context>
chip_gen: v6e
topology: v6e:2x2x1
jax: 0.10.0
libtpu: 0.0.40
codegen_flags: <defaults>
</compile_context>

<pallas_src>
import functools
import math

import jax
import jax.numpy as jnp
from jax.experimental import pallas as pl
from jax.experimental.pallas import tpu as pltpu


def _round_up(n, m):
    return ((n + m - 1) // m) * m


def _has_bf16_valu():
    """True on TPU generations with a bf16 VALU (v6e, v7x); False on v5e and older."""
    try:
        kind = jax.devices()[0].device_kind.lower()
    except Exception:
        return False
    return not any(v in kind for v in ("v2", "v3", "v4", "v5"))


def _feature_mixer_kernel(x_ref, w1_ref, b1_ref, w2_ref, b2_ref, o_ref,
                          *, true_dim, bf16_elementwise):
    """One grid step = one (TM, D) row tile; weights stay VMEM-resident."""
    x = x_ref[...].astype(jnp.float32)                          # (TM, D)

    # ---- LayerNorm statistics (two-pass: no E[x^2] - E[x]^2 cancellation) ----
    inv_d = jnp.float32(1.0 / true_dim)
    mean = jnp.sum(x, axis=-1, keepdims=True) * inv_d           # (TM, 1)
    xc = x - mean
    var = jnp.sum(xc * xc, axis=-1, keepdims=True) * inv_d
    inv_std = jax.lax.rsqrt(var + 1e-5)                         # PyTorch eps default

    # gamma/beta are folded into w1/b1 on the host (prepare_params), so the
    # normalized activation goes straight to the bf16 MXU operand.
    if bf16_elementwise:
        # v6e/v7x: bf16 VALU -> normalize at 2 elems/lane; reductions stay f32.
        xn = xc.astype(jnp.bfloat16) * inv_std.astype(jnp.bfloat16)
    else:
        # v5e: no bf16 VALU -> keep the multiply in f32, cast once for the MXU.
        xn = (xc * inv_std).astype(jnp.bfloat16)

    # ---- Linear1 (D -> Hp) + ReLU  (bf16 MXU operands, f32 accumulation) ----
    h = jnp.dot(xn, w1_ref[...], preferred_element_type=jnp.float32)
    h = jnp.maximum(h + b1_ref[...], 0.0).astype(jnp.bfloat16)     # (TM, Hp)

    # ---- Linear2 (Hp -> D) ----
    y = jnp.dot(h, w2_ref[...], preferred_element_type=jnp.float32)
    y = y + b2_ref[...]                                          # (TM, D)

    # ---- Residual: re-read the x tile (short live range for the f32 copy);
    #      the add runs in the input dtype — no redundant f32 upcast.
    o_ref[...] = (x_ref[...] + y.astype(x_ref.dtype)).astype(o_ref.dtype)


def prepare_params(params, *, weight_dtype=jnp.bfloat16):
    """One-time parameter transform (call once, reuse across forward calls).

    * Folds the LayerNorm affine (gamma, beta) into Linear1 — exact, since a
      diagonal scale before a linear layer is itself linear.
    * Zero-pads only the hidden dim to a multiple of 128 (lane-dense MXU
      tiles); the in_dim axes stay at their true size so activation HBM
      traffic is unpadded.
    * Casts the weight matrices to bf16 (MXU-native); biases stay f32.
    """
    f32 = jnp.float32
    w1 = params["w1"].astype(f32)             # (D, H)  == PyTorch W1.T
    w2 = params["w2"].astype(f32)             # (H, D)  == PyTorch W2.T
    in_dim, hidden = w1.shape
    h_pad = _round_up(hidden, 128)

    gamma = params["gamma"].astype(f32)
    beta = params["beta"].astype(f32)
    w1f = gamma[:, None] * w1                            # diag(gamma) @ W1.T
    b1f = beta @ w1 + params["b1"].astype(f32)           # beta  @ W1.T + b1

    return {
        "w1": jnp.pad(w1f, ((0, 0), (0, h_pad - hidden))).astype(weight_dtype),
        "b1": jnp.pad(b1f, (0, h_pad - hidden)).reshape(1, h_pad),
        "w2": jnp.pad(w2, ((0, h_pad - hidden), (0, 0))).astype(weight_dtype),
        "b2": params["b2"].astype(f32).reshape(1, in_dim),
    }


def feature_mixer_layer(x, prepared, *, tile_rows=1024, bf16_elementwise=None):
    """x: (..., in_dim); prepared: output of prepare_params()."""
    orig_shape = x.shape
    in_dim = orig_shape[-1]
    w1p, b1p, w2p, b2p = (prepared[k] for k in ("w1", "b1", "w2", "b2"))
    assert w1p.shape[0] == in_dim and w2p.shape[1] == in_dim, "param/input dim mismatch"
    h_pad = w1p.shape[1]
    rows = math.prod(orig_shape[:-1]) if len(orig_shape) > 1 else 1

    if bf16_elementwise is None:
        bf16_elementwise = _has_bf16_valu()

    # ---- row tiling: biggest tile that fits, multiple of 8 sublanes ----
    tm = min(tile_rows, _round_up(rows, 8))
    grid_len = pl.cdiv(rows, tm)
    # Best effort: keep the grid length even and >= 2 so the "parallel" row
    # axis shards evenly over v7x's two TensorCores (no-op on v5e/v6e).
    if rows > 16 and grid_len % 2 == 1:
        tm = max(8, _round_up(pl.cdiv(rows, grid_len + 1), 8))
        grid_len = pl.cdiv(rows, tm)

    x2d = x.reshape(rows, in_dim)             # no padding: reshape is free

    itemsize = jnp.dtype(x.dtype).itemsize
    cost = pl.CostEstimate(
        flops=4 * rows * in_dim * h_pad + 10 * rows * in_dim,
        bytes_accessed=(2 * rows * in_dim * itemsize
                        + w1p.size * 2 + w2p.size * 2
                        + b1p.size * 4 + b2p.size * 4),
        transcendentals=rows,
    )

    out = pl.pallas_call(
        functools.partial(_feature_mixer_kernel, true_dim=in_dim,
                          bf16_elementwise=bf16_elementwise),
        out_shape=jax.ShapeDtypeStruct((rows, in_dim), x.dtype),
        grid=(grid_len,),
        in_specs=[
            pl.BlockSpec((tm, in_dim), lambda i: (i, 0)),      # x   (row-tiled)
            pl.BlockSpec((in_dim, h_pad), lambda i: (0, 0)),   # w1  (resident)
            pl.BlockSpec((1, h_pad), lambda i: (0, 0)),        # b1  (resident)
            pl.BlockSpec((h_pad, in_dim), lambda i: (0, 0)),   # w2  (resident)
            pl.BlockSpec((1, in_dim), lambda i: (0, 0)),       # b2  (resident)
        ],
        out_specs=pl.BlockSpec((tm, in_dim), lambda i: (i, 0)),
        compiler_params=pltpu.CompilerParams(
            dimension_semantics=("parallel",),        # shards rows over TCs on v7x
            vmem_limit_bytes=48 * 1024 * 1024,        # under v7x's 64 MiB physical
        ),
        cost_estimate=cost,
    )(x2d, w1p, b1p, w2p, b2p)

    return out.reshape(orig_shape)


def init_params(key, in_dim, mlp_ratio=1, dtype=jnp.float32):
    """Deterministic init mirroring the module's __init__:
    trunc_normal_(std=0.02) for Linear weights, zeros for biases,
    LayerNorm gamma=1 / beta=0."""
    hidden = int(in_dim * mlp_ratio)
    k1, k2 = jax.random.split(key)
    w1_t = 0.02 * jax.random.truncated_normal(k1, -2.0, 2.0, (hidden, in_dim), dtype)
    w2_t = 0.02 * jax.random.truncated_normal(k2, -2.0, 2.0, (in_dim, hidden), dtype)
    return {
        "gamma": jnp.ones((in_dim,), dtype),
        "beta": jnp.zeros((in_dim,), dtype),
        "w1": w1_t.T,                        # stored as (in_dim, hidden) for x @ w1
        "b1": jnp.zeros((hidden,), dtype),
        "w2": w2_t.T,                        # stored as (hidden, in_dim)
        "b2": jnp.zeros((in_dim,), dtype),
    }


def _reference(x, p):
    """Pure-JAX f32 reference for correctness check."""
    xf = x.astype(jnp.float32)
    mean = jnp.mean(xf, axis=-1, keepdims=True)
    var = jnp.mean((xf - mean) ** 2, axis=-1, keepdims=True)
    xn = (xf - mean) / jnp.sqrt(var + 1e-5) * p["gamma"] + p["beta"]
    h = jnp.maximum(xn @ p["w1"] + p["b1"], 0.0)
    y = h @ p["w2"] + p["b2"]
    return (xf + y).astype(x.dtype)


if __name__ == "__main__":
    # MixVPR applies FeatureMixerLayer to flattened features: x is (B, C, h*w),
    # in_dim = h*w. Small synthetic shapes: B=2, C=4, in_dim=16, mlp_ratio=1.
    B, C, in_dim, mlp_ratio = 2, 4, 16, 1
    hidden = int(in_dim * mlp_ratio)

    key = jax.random.PRNGKey(0)
    kx, kp, kg, kb, k1, k2 = jax.random.split(key, 6)
    x = jax.random.normal(kx, (B, C, in_dim), jnp.float32)
    params = init_params(kp, in_dim, mlp_ratio)
    # Perturb affine/bias params so the folded-affine and bias paths are exercised.
    params["gamma"] = 1.0 + 0.1 * jax.random.normal(kg, (in_dim,), jnp.float32)
    params["beta"] = 0.1 * jax.random.normal(kb, (in_dim,), jnp.float32)
    params["b1"] = 0.1 * jax.random.normal(k1, (hidden,), jnp.float32)
    params["b2"] = 0.1 * jax.random.normal(k2, (in_dim,), jnp.float32)

    prepared = prepare_params(params)        # one-time weight transform (hoisted)
    out = jax.block_until_ready(feature_mixer_layer(x, prepared))

    ref = _reference(x, params)
    assert out.shape == x.shape and out.dtype == x.dtype
    # bf16 MXU operands with f32 accumulation -> small, bounded deviation from f32 ref.
    assert jnp.allclose(out, ref, atol=1e-2, rtol=1e-2), "mismatch vs reference"

    print("KERNEL_OK")
</pallas_src>

<mosaic_0001>
module attributes {stable_mosaic.version = 11 : i64} {
  func.func @_feature_mixer_kernel(%arg0: i32, %arg1: memref<8x16xf32, #tpu.memory_space<vmem>>, %arg2: memref<16x128xbf16, #tpu.memory_space<vmem>>, %arg3: memref<1x128xf32, #tpu.memory_space<vmem>>, %arg4: memref<128x16xbf16, #tpu.memory_space<vmem>>, %arg5: memref<1x16xf32, #tpu.memory_space<vmem>>, %arg6: memref<8x16xf32, #tpu.memory_space<vmem>>) attributes {dimension_semantics = [#tpu.dimension_semantics<parallel>], iteration_bounds = array<i64: 1>, scalar_prefetch = 0 : i64, scratch_operands = 0 : i64, tpu.core_type = #tpu.core_type<tc>, window_params = [{transform_indices = @transform_0, window_bounds = array<i64: 8, 16>}, {pipeline_mode = #tpu.pipeline_mode<synchronous>, transform_indices = @transform_1, window_bounds = array<i64: 16, 128>}, {pipeline_mode = #tpu.pipeline_mode<synchronous>, transform_indices = @transform_2, window_bounds = array<i64: 1, 128>}, {pipeline_mode = #tpu.pipeline_mode<synchronous>, transform_indices = @transform_3, window_bounds = array<i64: 128, 16>}, {pipeline_mode = #tpu.pipeline_mode<synchronous>, transform_indices = @transform_4, window_bounds = array<i64: 1, 16>}, {transform_indices = @transform_5, window_bounds = array<i64: 8, 16>}]} {
    %c0 = arith.constant 0 : index
    %c0_0 = arith.constant 0 : index
    %0 = vector.load %arg1[%c0, %c0_0] : memref<8x16xf32, #tpu.memory_space<vmem>>, vector<8x16xf32>
    %cst = arith.constant dense<0.000000e+00> : vector<8xf32>
    %1 = vector.multi_reduction <add>, %0, %cst [1] : vector<8x16xf32> to vector<8xf32>
    %2 = vector.shape_cast %1 : vector<8xf32> to vector<8x1xf32>
    %cst_1 = arith.constant 6.250000e-02 : f32
    %3 = vector.broadcast %cst_1 : f32 to vector<8x1xf32>
    %4 = arith.mulf %2, %3 : vector<8x1xf32>
    %5 = vector.broadcast %4 : vector<8x1xf32> to vector<8x16xf32>
    %6 = arith.subf %0, %5 : vector<8x16xf32>
    %7 = arith.mulf %6, %6 : vector<8x16xf32>
    %cst_2 = arith.constant dense<0.000000e+00> : vector<8xf32>
    %8 = vector.multi_reduction <add>, %7, %cst_2 [1] : vector<8x16xf32> to vector<8xf32>
    %9 = vector.shape_cast %8 : vector<8xf32> to vector<8x1xf32>
    %cst_3 = arith.constant 6.250000e-02 : f32
    %10 = vector.broadcast %cst_3 : f32 to vector<8x1xf32>
    %11 = arith.mulf %9, %10 : vector<8x1xf32>
    %cst_4 = arith.constant 9.99999974E-6 : f32
    %12 = vector.broadcast %cst_4 : f32 to vector<8x1xf32>
    %13 = arith.addf %11, %12 : vector<8x1xf32>
    %14 = math.rsqrt %13 : vector<8x1xf32>
    %15 = arith.truncf %6 : vector<8x16xf32> to vector<8x16xbf16>
    %16 = arith.truncf %14 : vector<8x1xf32> to vector<8x1xbf16>
    %17 = vector.broadcast %16 : vector<8x1xbf16> to vector<8x16xbf16>
    %18 = arith.mulf %15, %17 : vector<8x16xbf16>
    %c0_5 = arith.constant 0 : index
    %c0_6 = arith.constant 0 : index
    %19 = vector.load %arg2[%c0_5, %c0_6] : memref<16x128xbf16, #tpu.memory_space<vmem>>, vector<16x128xbf16>
    %cst_7 = arith.constant dense<0.000000e+00> : vector<8x128xf32>
    %20 = tpu.matmul %18, %19, %cst_7 {dimension_numbers = #tpu.dot_dimension_numbers<[1], [0], [0], [1], [0, 0, 1, 1], [], []>} : vector<8x16xbf16>, vector<16x128xbf16>, vector<8x128xf32> -> vector<8x128xf32>
    %c0_8 = arith.constant 0 : index
    %c0_9 = arith.constant 0 : index
    %21 = vector.load %arg3[%c0_8, %c0_9] : memref<1x128xf32, #tpu.memory_space<vmem>>, vector<1x128xf32>
    %22 = vector.broadcast %21 : vector<1x128xf32> to vector<8x128xf32>
    %23 = arith.addf %20, %22 : vector<8x128xf32>
    %cst_10 = arith.constant 0.000000e+00 : f32
    %24 = vector.broadcast %cst_10 : f32 to vector<8x128xf32>
    %25 = arith.maximumf %23, %24 : vector<8x128xf32>
    %26 = arith.truncf %25 : vector<8x128xf32> to vector<8x128xbf16>
    %c0_11 = arith.constant 0 : index
    %c0_12 = arith.constant 0 : index
    %27 = vector.load %arg4[%c0_11, %c0_12] : memref<128x16xbf16, #tpu.memory_space<vmem>>, vector<128x16xbf16>
    %cst_13 = arith.constant dense<0.000000e+00> : vector<8x16xf32>
    %28 = tpu.matmul %26, %27, %cst_13 {dimension_numbers = #tpu.dot_dimension_numbers<[1], [0], [0], [1], [0, 0, 1, 1], [], []>} : vector<8x128xbf16>, vector<128x16xbf16>, vector<8x16xf32> -> vector<8x16xf32>
    %c0_14 = arith.constant 0 : index
    %c0_15 = arith.constant 0 : index
    %29 = vector.load %arg5[%c0_14, %c0_15] : memref<1x16xf32, #tpu.memory_space<vmem>>, vector<1x16xf32>
    %30 = vector.broadcast %29 : vector<1x16xf32> to vector<8x16xf32>
    %31 = arith.addf %28, %30 : vector<8x16xf32>
    %c0_16 = arith.constant 0 : index
    %c0_17 = arith.constant 0 : index
    %32 = vector.load %arg1[%c0_16, %c0_17] : memref<8x16xf32, #tpu.memory_space<vmem>>, vector<8x16xf32>
    %33 = arith.addf %32, %31 : vector<8x16xf32>
    %c0_18 = arith.constant 0 : index
    %c0_19 = arith.constant 0 : index
    %34 = vector.load %arg6[%c0_18, %c0_19] : memref<8x16xf32, #tpu.memory_space<vmem>>, vector<8x16xf32>
    tpu.vector_store %arg6[%c0_18, %c0_19], %33 {strides = array<i32>} : memref<8x16xf32, #tpu.memory_space<vmem>>, vector<8x16xf32>,
    return
  }
  func.func @transform_0(%arg0: i32) -> (i32, i32) {
    %c0_i32 = arith.constant 0 : i32
    %c0_i32_0 = arith.constant 0 : i32
    return %arg0, %c0_i32 : i32, i32
  }
  func.func @transform_1(%arg0: i32) -> (i32, i32) {
    %c0_i32 = arith.constant 0 : i32
    %c0_i32_0 = arith.constant 0 : i32
    %c0_i32_1 = arith.constant 0 : i32
    return %c0_i32, %c0_i32_0 : i32, i32
  }
  func.func @transform_2(%arg0: i32) -> (i32, i32) {
    %c0_i32 = arith.constant 0 : i32
    %c0_i32_0 = arith.constant 0 : i32
    %c0_i32_1 = arith.constant 0 : i32
    return %c0_i32, %c0_i32_0 : i32, i32
  }
  func.func @transform_3(%arg0: i32) -> (i32, i32) {
    %c0_i32 = arith.constant 0 : i32
    %c0_i32_0 = arith.constant 0 : i32
    %c0_i32_1 = arith.constant 0 : i32
    return %c0_i32, %c0_i32_0 : i32, i32
  }
  func.func @transform_4(%arg0: i32) -> (i32, i32) {
    %c0_i32 = arith.constant 0 : i32
    %c0_i32_0 = arith.constant 0 : i32
    %c0_i32_1 = arith.constant 0 : i32
    return %c0_i32, %c0_i32_0 : i32, i32
  }
  func.func @transform_5(%arg0: i32) -> (i32, i32) {
    %c0_i32 = arith.constant 0 : i32
    %c0_i32_0 = arith.constant 0 : i32
    return %arg0, %c0_i32 : i32, i32
  }
}

</mosaic_0001>

<llo_original>
// kernel: tpu_custom_call.1
$region0: #{tpu_custom_call.1}
  #allocation0 [shape = 'u32[]', space=smem, size = 0x4, offset = 0x4, fixed_abs, tag = 'smem constant byte address 0x4 - core index']
  #allocation1 [shape = 'u32[144,128]{1,0:T(1,128)}', space=vmem, size = 0x12000, scoped, tag = 'internal scratch']
  %s0 = inlined_call_operand.vmem [shape: f32[8,16], index: 0, kind: input, shape index: {}]
  %s1 = inlined_call_operand.vmem [shape: bf16[16,128], index: 1, kind: input, shape index: {}]
  %s2 = inlined_call_operand.vmem [shape: f32[1,128], index: 2, kind: input, shape index: {}]
  %s3 = inlined_call_operand.vmem [shape: bf16[128,16], index: 3, kind: input, shape index: {}]
  %s4 = inlined_call_operand.vmem [shape: f32[1,16], index: 4, kind: input, shape index: {}]
  %s5 = inlined_call_operand.hbm [shape: f32[8,16], index: 5, kind: output, shape index: {}]
  %s6 = sld [smem:[#allocation0]]
  $region30: #{tpu_custom_call.1} parent=0
    _
  %s8 = ssub.s32 1, %s6
  %s9 = scalar_select 0, %s8, %s6
  $region1: #{tpu_custom_call.1} parent=0
    #allocation2 [shape = 'u8[4096]{0}', space=vmem, size = 0x1000, scoped, tag = 'output window, operand 0, single buffered']
    #allocation3 [shape = 's32[1]{0}', space=sflag, size = 0x4, scoped, tag = 'scoped memory for tpu_custom_call.1']
    %10 = vsyncpa [#allocation3], 0
    // Predicated region
    $region2: #{tpu_custom_call.1} parent=1 // pred_check
      _
    $region3: #{tpu_custom_call.1} parent=1 // pred_check_branch
      %12 = sbr.rel (0) target = $region5
    $region4: #{tpu_custom_call.1} parent=1 // pred_region
      _
    $region5: #{tpu_custom_call.1} parent=1 // pred_fallthru
      _
    // Predicated region
    $region6: #{tpu_custom_call.1} parent=1 // pred_check
      _
    $region7: #{tpu_custom_call.1} parent=1 // pred_check_branch
      %14 = sbr.rel (0) target = $region9
    $region8: #{tpu_custom_call.1} parent=1 // pred_region
      _
    $region9: #{tpu_custom_call.1} parent=1 // pred_fallthru
      _
    // Predicated region
    $region10: #{tpu_custom_call.1} parent=1 // pred_check
      _
    $region11: #{tpu_custom_call.1} parent=1 // pred_check_branch
      %16 = sbr.rel (0) target = $region13
    $region12: #{tpu_custom_call.1} parent=1 // pred_region
      _
    $region13: #{tpu_custom_call.1} parent=1 // pred_fallthru
      _
    // Predicated region
    $region14: #{tpu_custom_call.1} parent=1 // pred_check
      _
    $region15: #{tpu_custom_call.1} parent=1 // pred_check_branch
      %18 = sbr.rel (0) target = $region17
    $region16: #{tpu_custom_call.1} parent=1 // pred_region
      _
    $region17: #{tpu_custom_call.1} parent=1 // pred_fallthru
      _
    // Predicated region
    $region18: #{tpu_custom_call.1} parent=1 // pred_check
      _
    $region19: #{tpu_custom_call.1} parent=1 // pred_check_branch
      %20 = sbr.rel (0) target = $region21
    $region20: #{tpu_custom_call.1} parent=1 // pred_region
      _
    $region21: #{tpu_custom_call.1} parent=1 // pred_fallthru
      _
    %v22 = vld [vmem:[%s0] sm:$0xff]
    %vm23 = vcmask 130048
    %v24 = vsel %vm23, %v22, 0.0
    %25 = vadd.xlane.f32.xlu0 %v24
    %v26 = vpop.xlane.xlu0 %25
    %v27 = vmul.f32 %v26, 0.0625
    %v28 = vsub.f32 %v22, %v27
    %v29 = vmul.f32 %v28, %v28
    %v30 = vsel %vm23, %v29, 0.0
    %31 = vadd.xlane.f32.xlu0 %v30
    %v32 = vpop.xlane.xlu0 %31
    %v33 = vmul.f32 %v32, 0.0625
    %v34 = vadd.f32 %v33, 1e-05
    %v35 = vrsqrt.pop %v34
    %v36 = vpack.c.bf16 %v28, %v28
    %v37 = vpack.c.bf16 %v35, %v35
    %v38 = vmul.bf16 %v36, %v37
    %v39 = vld [vmem:[%s1] sm:$0xf]
    %v40 = vld [vmem:[%s1 + $0x4] sm:$0xf]
    %v41 = vld [vmem:[%s2] sm:$0x1]
    %v43 = vlaneseq
    %v44 = vshrl.u32 %v43, 7
    %v45 = vsub.s32 0, %v44
    %v46 = vrot.slane %v41, %v45
    %v50 = vunpack.c.l.b16 %v39
    %v51 = vunpack.c.l.b16 %v40
    %v52 = vpack.c.b16 %v51, %v50
    %v55 = vsel %vm23, %v38, 0
    %57 = vmatprep.subr.bf16.mxu0 0
    %58 = vmatpush1.bf16.msra.mxu0 0
    %59 = vmatprep.subr.bf16.mxu0 0
    %60 = vmatpush1.bf16.msra.mxu0 0
    %61 = vmatprep.subr.bf16.mxu0 0
    %62 = vmatpush1.bf16.msra.mxu0 0
    %63 = vmatprep.subr.bf16.mxu0 0
    %64 = vmatpush1.bf16.msra.mxu0 0
    %65 = vmatprep.subr.bf16.mxu0 0
    %66 = vmatpush1.bf16.msra.mxu0 0
    %67 = vmatprep.subr.bf16.mxu0 0
    %68 = vmatpush1.bf16.msra.mxu0 0
    %69 = vmatprep.subr.bf16.mxu0 0
    %70 = vmatpush1.bf16.msra.mxu0 0
    %71 = vmatprep.subr.bf16.mxu0 0
    %72 = vmatpush1.bf16.msra.mxu0 %v52
    %73 = vmatprep.subr.bf16.mxu0 0
    %74 = vmatpush2.bf16.msra.mxu0 0
    %75 = vmatprep.subr.bf16.mxu0 0
    %76 = vmatpush2.bf16.msra.mxu0 0
    %77 = vmatprep.subr.bf16.mxu0 0
    %78 = vmatpush2.bf16.msra.mxu0 0
    %79 = vmatprep.subr.bf16.mxu0 0
    %80 = vmatpush2.bf16.msra.mxu0 0
    %81 = vmatprep.subr.bf16.mxu0 0
    %82 = vmatpush2.bf16.msra.mxu0 0
    %83 = vmatprep.subr.bf16.mxu0 0
    %84 = vmatpush2.bf16.msra.mxu0 0
    %85 = vmatprep.subr.bf16.mxu0 0
    %86 = vmatpush2.bf16.msra.mxu0 0
    %87 = vmatprep.subr.bf16.mxu0 0
    %88 = vmatpush2.bf16.msra.mxu0 0
    %89 = vmatprep.mubr.bf16.mxu0 0
    %90 = vmatmul.mubr.bf16.gmra.mxu0 %v55
    %v91 = vpop.f32.mrf.mxu0
    %v92 = vadd.f32 %v46, %v91
    %v93 = vpop.f32.mrf.mxu0
    %v94 = vpop.f32.mrf.mxu0
    %v95 = vpop.f32.mrf.mxu0
    %96 = vdwg.mxu0
    %v97 = vmax.f32 %v92, 0.0
    %v98 = vpack.c.bf16 %v97, %v97
    %v99 = vld [vmem:[%s3] sm:$0xf]
    %v100 = vld [vmem:[%s3 + $0x4] sm:$0xf]
    %v101 = vld [vmem:[%s3 + $0x8] sm:$0xf]
    %v102 = vld [vmem:[%s3 + $0xc] sm:$0xf]
    %v103 = vld [vmem:[%s3 + $0x10] sm:$0xf]
    %v104 = vld [vmem:[%s3 + $0x14] sm:$0xf]
    %v105 = vld [vmem:[%s3 + $0x18] sm:$0xf]
    %v106 = vld [vmem:[%s3 + $0x1c] sm:$0xf]
    %v107 = vld [vmem:[%s3 + $0x20] sm:$0xf]
    %v108 = vld [vmem:[%s3 + $0x24] sm:$0xf]
    %v109 = vld [vmem:[%s3 + $0x28] sm:$0xf]
    %v110 = vld [vmem:[%s3 + $0x2c] sm:$0xf]
    %v111 = vld [vmem:[%s3 + $0x30] sm:$0xf]
    %v112 = vld [vmem:[%s3 + $0x34] sm:$0xf]
    %v113 = vld [vmem:[%s3 + $0x38] sm:$0xf]
    %v114 = vld [vmem:[%s3 + $0x3c] sm:$0xf]
    %v115 = vld [vmem:[%s4] sm:$0x1]
    %v117 = vlaneseq
    %v118 = vshrl.u32 %v117, 7
    %v119 = vsub.s32 0, %v118
    %v120 = vrot.slane %v115, %v119
    %v138 = vunpack.c.l.b16 %v99
    %v139 = vunpack.c.l.b16 %v100
    %v140 = vunpack.c.l.b16 %v101
    %v141 = vunpack.c.l.b16 %v102
    %v142 = vunpack.c.l.b16 %v103
    %v143 = vunpack.c.l.b16 %v104
    %v144 = vunpack.c.l.b16 %v105
    %v145 = vunpack.c.l.b16 %v106
    %v146 = vunpack.c.l.b16 %v107
    %v147 = vunpack.c.l.b16 %v108
    %v148 = vunpack.c.l.b16 %v109
    %v149 = vunpack.c.l.b16 %v110
    %v150 = vunpack.c.l.b16 %v111
    %v151 = vunpack.c.l.b16 %v112
    %v152 = vunpack.c.l.b16 %v113
    %v153 = vunpack.c.l.b16 %v114
    %v154 = vpack.c.b16 %v139, %v138
    %v155 = vpack.c.b16 %v141, %v140
    %v156 = vpack.c.b16 %v143, %v142
    %v157 = vpack.c.b16 %v145, %v144
    %v158 = vpack.c.b16 %v147, %v146
    %v159 = vpack.c.b16 %v149, %v148
    %v160 = vpack.c.b16 %v151, %v150
    %v161 = vpack.c.b16 %v153, %v152
    %170 = vmatprep.subr.bf16.mxu0 0
    %171 = vmatpush1.bf16.msra.mxu0 %v161
    %172 = vmatprep.subr.bf16.mxu0 0
    %173 = vmatpush1.bf16.msra.mxu0 %v160
    %174 = vmatprep.subr.bf16.mxu0 0
    %175 = vmatpush1.bf16.msra.mxu0 %v159
    %176 = vmatprep.subr.bf16.mxu0 0
    %177 = vmatpush1.bf16.msra.mxu0 %v158
    %178 = vmatprep.subr.bf16.mxu0 0
    %179 = vmatpush1.bf16.msra.mxu0 %v157
    %180 = vmatprep.subr.bf16.mxu0 0
    %181 = vmatpush1.bf16.msra.mxu0 %v156
    %182 = vmatprep.subr.bf16.mxu0 0
    %183 = vmatpush1.bf16.msra.mxu0 %v155
    %184 = vmatprep.subr.bf16.mxu0 0
    %185 = vmatpush1.bf16.msra.mxu0 %v154
    %186 = vmatprep.subr.bf16.mxu0 0
    %187 = vmatpush2.bf16.msra.mxu0 0
    %188 = vmatprep.subr.bf16.mxu0 0
    %189 = vmatpush2.bf16.msra.mxu0 0
    %190 = vmatprep.subr.bf16.mxu0 0
    %191 = vmatpush2.bf16.msra.mxu0 0
    %192 = vmatprep.subr.bf16.mxu0 0
    %193 = vmatpush2.bf16.msra.mxu0 0
    %194 = vmatprep.subr.bf16.mxu0 0
    %195 = vmatpush2.bf16.msra.mxu0 0
    %196 = vmatprep.subr.bf16.mxu0 0
    %197 = vmatpush2.bf16.msra.mxu0 0
    %198 = vmatprep.subr.bf16.mxu0 0
    %199 = vmatpush2.bf16.msra.mxu0 0
    %200 = vmatprep.subr.bf16.mxu0 0
    %201 = vmatpush2.bf16.msra.mxu0 0
    %202 = vmatprep.mubr.bf16.mxu0 0
    %203 = vmatmul.mubr.bf16.gmra.mxu0 %v98
    %v204 = vpop.f32.mrf.mxu0
    %v205 = vadd.f32 %v120, %v204
    %v206 = vpop.f32.mrf.mxu0
    %v207 = vpop.f32.mrf.mxu0
    %v208 = vpop.f32.mrf.mxu0
    %209 = vdwg.mxu0
    %v210 = vadd.f32 %v22, %v205
    %211 = vst.msk [vmem:[#allocation2] sm:$0xff] %vm23, %v210
    // Predicated region
    $region22: #{tpu_custom_call.1} parent=1 // pred_check
      _
    $region23: #{tpu_custom_call.1} parent=1 // pred_check_branch
      %213 = sbr.rel (0) target = $region25
    $region24: #{tpu_custom_call.1} parent=1 // pred_region
      %s215 = ssub.s32 128, 128
      %216 = vsyncadd [#allocation3], %s215
      %s218 = sshll.u32 [#allocation2], 4
      %s219 = int_to_ptr.vmem [resolvable:$true] %s218
      %221 = dma.vmem_to_hbm [thread:$0]  %s219, 128, %s5, [#allocation3]
    $region25: #{tpu_custom_call.1} parent=1 // pred_fallthru
      _
    // Predicated region
    $region26: #{tpu_custom_call.1} parent=1 // pred_check
      _
    $region27: #{tpu_custom_call.1} parent=1 // pred_check_branch
      %223 = sbr.rel (0) target = $region29
    $region28: #{tpu_custom_call.1} parent=1 // pred_region
      %224 = dma.done [#allocation3], 128
    $region29: #{tpu_custom_call.1} parent=1 // pred_fallthru
      _
    %225 = vsyncpa [#allocation3], 1

</llo_original>
